<compile_context>
chip_gen: v5e
topology: v5e:2x2
jax: 0.10.0
libtpu: 0.0.40
codegen_flags: <defaults>
</compile_context>

<pallas_src>
import jax
import jax.numpy as jnp
from jax.experimental import pallas as pl
from jax.experimental.pallas import tpu as pltpu


def _round_up(v, m):
    return (v + m - 1) // m * m


def _conv_bn_relu_kernel(x_ref, w_ref, shift_ref, o_ref):
    # x_ref    : (K*C_in, TL)    bf16  pre-shifted activation tile (lane-aligned)
    # w_ref    : (C_out, K*C_in) bf16  BN-scale-folded, tap-major weights
    # shift_ref: (C_out, 1)      f32   folded conv bias + BN shift
    # o_ref    : (C_out, TL)           lane-dense output tile
    acc = jnp.dot(w_ref[...], x_ref[...], preferred_element_type=jnp.float32)
    acc = acc + shift_ref[...]                               # conv bias + BatchNorm1d (eval), folded
    o_ref[...] = jnp.maximum(acc, 0.0).astype(o_ref.dtype)   # ReLU; Dropout identity in eval


def _vmem_limit_bytes():
    # Generation-aware scoped-VMEM limit: ~half of per-TC VMEM, capped at 40 MiB
    # (=> ~32 MiB on v7x's 64 MiB/TC, 40 MiB on v5e/v6e's 128 MiB).
    try:
        cap = int(pltpu.get_tpu_info().vmem_capacity_bytes)
    except Exception:
        cap = 64 * 1024 * 1024
    return max(16 * 1024 * 1024, min(cap // 2, 40 * 1024 * 1024))


def _pick_tile_len(Lp, C_out, KC, N, out_bytes, vmem_limit):
    cands = []
    for t in (8192, 4096, 2048, 1024, 512, 256, 128):
        if Lp % t:
            continue
        if C_out * t * 4 > 128 * 1024:            # f32 accumulator <= ~half the vreg file
            continue
        if 2 * t * (KC * 2 + C_out * out_bytes) > vmem_limit // 2:   # double-buffered blocks
            continue
        cands.append(t)
    if not cands:
        cands = [128 if Lp % 128 == 0 else Lp]
    # v7x megacore: prefer the largest TL that still leaves >= 2 grid steps.
    for t in cands:
        if N * (Lp // t) >= 2:
            return t
    return cands[-1]


def conv1d_block(x, weight, bias, gamma, beta, running_mean, running_var,
                 eps=1e-5, out_dtype=jnp.float32):
    N, C_in, L = x.shape
    C_out, _, K = weight.shape
    L_out = L - K + 1
    assert L_out >= 1
    f32 = jnp.float32

    # ---- fold BatchNorm1d (eval mode, running stats) into weight / shift ----
    scale = gamma.astype(f32) / jnp.sqrt(running_var.astype(f32) + eps)       # (C_out,)
    w_fold = weight.astype(f32) * scale[:, None, None]                        # (C_out, C_in, K)
    shift = bias.astype(f32) * scale + (beta.astype(f32)
                                        - running_mean.astype(f32) * scale)   # (C_out,)

    # tap-major weights for the single contraction: w2[co, k*C_in + ci] = w_fold[co, ci, k]
    KC = K * C_in
    w2 = jnp.transpose(w_fold, (0, 2, 1)).reshape(C_out, KC).astype(jnp.bfloat16)
    shift2 = shift.reshape(C_out, 1)                                          # (C_out, 1) f32

    # ---- pre-shift x ("im2col-lite"): x_sh[n, k*C_in + ci, l] = x[n, ci, l + k] ----
    Lp = _round_up(L_out, 128)                    # lane-dense per-batch output width
    xb = x.astype(jnp.bfloat16)                   # cast first: halves pre-pass traffic
    xb = jnp.pad(xb, ((0, 0), (0, 0), (0, Lp + K - 1 - L)))                   # (N, C_in, Lp+K-1)
    x_sh = jnp.stack([xb[:, :, k:k + Lp] for k in range(K)], axis=1)          # (N, K, C_in, Lp)
    x_sh = x_sh.reshape(N, KC, Lp)
    # Batches are separate along dim 0 -> no cross-batch halo; columns in
    # [L_out, Lp) only see zero padding and are dropped by the final slice.

    out_bytes = jnp.dtype(out_dtype).itemsize
    vmem_limit = _vmem_limit_bytes()
    TL = _pick_tile_len(Lp, C_out, KC, N, out_bytes, vmem_limit)

    cost = pl.CostEstimate(
        flops=2 * N * C_out * KC * Lp,
        transcendentals=0,
        bytes_accessed=(x_sh.size * 2 + w2.size * 2 + C_out * 4
                        + N * C_out * Lp * out_bytes),
    )

    out = pl.pallas_call(
        _conv_bn_relu_kernel,
        out_shape=jax.ShapeDtypeStruct((N, C_out, Lp), out_dtype),
        grid_spec=pltpu.PrefetchScalarGridSpec(
            num_scalar_prefetch=0,
            grid=(N, Lp // TL),
            in_specs=[
                # streamed, 128-aligned x tiles (dim 0 squeezed away in-kernel)
                pl.BlockSpec((None, KC, TL), lambda n, t: (n, 0, t)),
                # constant-index weights / shift: a few hundred bytes, stay resident
                pl.BlockSpec((C_out, KC), lambda n, t: (0, 0)),
                pl.BlockSpec((C_out, 1), lambda n, t: (0, 0)),
            ],
            out_specs=pl.BlockSpec((None, C_out, TL), lambda n, t: (n, 0, t)),
        ),
        compiler_params=pltpu.CompilerParams(
            dimension_semantics=("parallel", "parallel"),
            vmem_limit_bytes=vmem_limit,
        ),
        cost_estimate=cost,
    )(x_sh, w2, shift2)

    # Output already in (N, C_out, Lp) layout — just drop the lane padding.
    return out[:, :, :L_out]


def _reference(x, weight, bias, gamma, beta, running_mean, running_var,
               eps=1e-5, mxu_dtype=jnp.float32):
    # Plain-JAX reference (optionally with bf16 MXU operands to match the kernel).
    f32 = jnp.float32
    scale = gamma / jnp.sqrt(running_var + eps)
    w_fold = (weight * scale[:, None, None]).astype(mxu_dtype)
    shift = bias * scale + (beta - running_mean * scale)
    y = jax.lax.conv_general_dilated(
        x.astype(mxu_dtype), w_fold, window_strides=(1,), padding="VALID",
        dimension_numbers=("NCH", "OIH", "NCH"),
        preferred_element_type=f32,
    )
    y = y + shift[None, :, None]
    return jnp.maximum(y, 0.0)


if __name__ == "__main__":
    key = jax.random.PRNGKey(0)
    k_x, k_w, k_b, k_g, k_be, k_m, k_v = jax.random.split(key, 7)

    N, C_in, C_out, K, L = 2, 4, 8, 3, 16

    x = jax.random.normal(k_x, (N, C_in, L), dtype=jnp.float32)
    weight = jax.random.normal(k_w, (C_out, C_in, K), dtype=jnp.float32) * 0.1
    bias = jax.random.normal(k_b, (C_out,), dtype=jnp.float32) * 0.1
    gamma = 1.0 + 0.1 * jax.random.normal(k_g, (C_out,), dtype=jnp.float32)
    beta = 0.1 * jax.random.normal(k_be, (C_out,), dtype=jnp.float32)
    running_mean = 0.1 * jax.random.normal(k_m, (C_out,), dtype=jnp.float32)
    running_var = jnp.abs(1.0 + 0.1 * jax.random.normal(k_v, (C_out,), dtype=jnp.float32))

    out = conv1d_block(x, weight, bias, gamma, beta, running_mean, running_var)
    out = jax.block_until_ready(out)
    assert out.shape == (N, C_out, L - K + 1)
    assert out.dtype == jnp.float32

    # Exact-math check against a reference using the same bf16 MXU operands.
    ref_bf16 = _reference(x, weight, bias, gamma, beta, running_mean, running_var,
                          mxu_dtype=jnp.bfloat16)
    assert jnp.allclose(out, ref_bf16, atol=1e-4, rtol=1e-4), "mismatch vs bf16-matched reference"

    # Loose check against full-f32 math (bf16 operand rounding only).
    ref_f32 = _reference(x, weight, bias, gamma, beta, running_mean, running_var,
                         mxu_dtype=jnp.float32)
    assert jnp.allclose(out, ref_f32, atol=3e-2, rtol=3e-2), "mismatch vs f32 reference"

    print("KERNEL_OK")
</pallas_src>

<mosaic_0001>
module attributes {stable_mosaic.version = 11 : i64} {
  func.func @_conv_bn_relu_kernel(%arg0: i32, %arg1: i32, %arg2: memref<1x12x128xbf16, #tpu.memory_space<vmem>>, %arg3: memref<8x12xbf16, #tpu.memory_space<vmem>>, %arg4: memref<8x1xf32, #tpu.memory_space<vmem>>, %arg5: memref<1x8x128xf32, #tpu.memory_space<vmem>>) attributes {dimension_semantics = [#tpu.dimension_semantics<parallel>, #tpu.dimension_semantics<parallel>], iteration_bounds = array<i64: 2, 1>, scalar_prefetch = 0 : i64, scratch_operands = 0 : i64, tpu.core_type = #tpu.core_type<tc>, window_params = [{transform_indices = @transform_0, window_bounds = array<i64: 1, 12, 128>}, {pipeline_mode = #tpu.pipeline_mode<synchronous>, transform_indices = @transform_1, window_bounds = array<i64: 8, 12>}, {pipeline_mode = #tpu.pipeline_mode<synchronous>, transform_indices = @transform_2, window_bounds = array<i64: 8, 1>}, {transform_indices = @transform_3, window_bounds = array<i64: 1, 8, 128>}]} {
    %c0 = arith.constant 0 : index
    %c0_0 = arith.constant 0 : index
    %0 = vector.load %arg3[%c0, %c0_0] : memref<8x12xbf16, #tpu.memory_space<vmem>>, vector<8x12xbf16>
    %c0_1 = arith.constant 0 : index
    %c0_2 = arith.constant 0 : index
    %c0_3 = arith.constant 0 : index
    %1 = vector.load %arg2[%c0_1, %c0_2, %c0_3] : memref<1x12x128xbf16, #tpu.memory_space<vmem>>, vector<1x12x128xbf16>
    %2 = vector.shape_cast %1 : vector<1x12x128xbf16> to vector<12x128xbf16>
    %cst = arith.constant dense<0.000000e+00> : vector<8x128xf32>
    %3 = tpu.matmul %0, %2, %cst {dimension_numbers = #tpu.dot_dimension_numbers<[1], [0], [0], [1], [0, 0, 1, 1], [], []>} : vector<8x12xbf16>, vector<12x128xbf16>, vector<8x128xf32> -> vector<8x128xf32>
    %c0_4 = arith.constant 0 : index
    %c0_5 = arith.constant 0 : index
    %4 = vector.load %arg4[%c0_4, %c0_5] : memref<8x1xf32, #tpu.memory_space<vmem>>, vector<8x1xf32>
    %5 = vector.broadcast %4 : vector<8x1xf32> to vector<8x128xf32>
    %6 = arith.addf %3, %5 : vector<8x128xf32>
    %cst_6 = arith.constant 0.000000e+00 : f32
    %7 = vector.broadcast %cst_6 : f32 to vector<8x128xf32>
    %8 = arith.maximumf %6, %7 : vector<8x128xf32>
    %c0_7 = arith.constant 0 : index
    %c0_8 = arith.constant 0 : index
    %c0_9 = arith.constant 0 : index
    %9 = vector.load %arg5[%c0_7, %c0_8, %c0_9] : memref<1x8x128xf32, #tpu.memory_space<vmem>>, vector<1x8x128xf32>
    %10 = vector.shape_cast %9 : vector<1x8x128xf32> to vector<8x128xf32>
    %11 = vector.shape_cast %8 : vector<8x128xf32> to vector<1x8x128xf32>
    tpu.vector_store %arg5[%c0_7, %c0_8, %c0_9], %11 {strides = array<i32>} : memref<1x8x128xf32, #tpu.memory_space<vmem>>, vector<1x8x128xf32>,
    return
  }
  func.func @transform_0(%arg0: i32, %arg1: i32) -> (i32, i32, i32) {
    %c0_i32 = arith.constant 0 : i32
    %c0_i32_0 = arith.constant 0 : i32
    return %arg0, %c0_i32, %arg1 : i32, i32, i32
  }
  func.func @transform_1(%arg0: i32, %arg1: i32) -> (i32, i32) {
    %c0_i32 = arith.constant 0 : i32
    %c0_i32_0 = arith.constant 0 : i32
    %c0_i32_1 = arith.constant 0 : i32
    return %c0_i32, %c0_i32_0 : i32, i32
  }
  func.func @transform_2(%arg0: i32, %arg1: i32) -> (i32, i32) {
    %c0_i32 = arith.constant 0 : i32
    %c0_i32_0 = arith.constant 0 : i32
    %c0_i32_1 = arith.constant 0 : i32
    return %c0_i32, %c0_i32_0 : i32, i32
  }
  func.func @transform_3(%arg0: i32, %arg1: i32) -> (i32, i32, i32) {
    %c0_i32 = arith.constant 0 : i32
    %c0_i32_0 = arith.constant 0 : i32
    return %arg0, %c0_i32, %arg1 : i32, i32, i32
  }
}

</mosaic_0001>

<llo_original>
// kernel: tpu_custom_call.1
$region0: #{tpu_custom_call.1}
  #allocation0 [shape = 'u32[]', space=smem, size = 0x4, offset = 0x4, fixed_abs, tag = 'smem constant byte address 0x4 - core index']
  #allocation1 [shape = 'u32[72,128]{1,0:T(1,128)}', space=vmem, size = 0x9000, scoped, tag = 'internal scratch']
  %s0 = inlined_call_operand.vmem [shape: bf16[2,12,128], index: 0, kind: input, shape index: {}]
  %s1 = inlined_call_operand.vmem [shape: bf16[8,12], index: 1, kind: input, shape index: {}]
  %s2 = inlined_call_operand.vmem [shape: f32[8,1], index: 2, kind: input, shape index: {}]
  %s3 = inlined_call_operand.hbm [shape: f32[2,8,128], index: 3, kind: output, shape index: {}]
  %s4 = sld [smem:[#allocation0]]
  $region45: #{tpu_custom_call.1} parent=0
    _
  %s6 = ssub.s32 1, %s4
  %s7 = scalar_select 0, %s6, %s4
  $region1: #{tpu_custom_call.1} parent=0
    #allocation2 [shape = 'u8[8192]{0}', space=vmem, size = 0x2000, scoped, tag = 'output window, operand 0']
    #allocation3 [shape = 's32[2]{0}', space=sflag, size = 0x8, scoped, tag = 'scoped memory for tpu_custom_call.1']
    %8 = vsyncpa [#allocation3], 0
    %s9 = scalar_lea.sflag [#allocation3], 1
    %10 = vsyncpa %s9, 0
    loop: start=0, step=1, limit=4
    $region2: #{tpu_custom_call.1} parent=1 // loop_pre_header
      _
    $region3: #{tpu_custom_call.1} parent=1 // loop_header
      %s12 = sphi 0, %s16
      %p13 = scmp.ge.s32.totalorder %s12, 4
      %s19 = sphi 0, %s31
      %s20 = sphi 0, %s27
      %s21 = sphi 0, %s19
      %s22 = sphi 0, %s20
      %s23 = sphi 0, %s21
      %s24 = sphi 0, %s22
      %s36 = sphi 0, %s38
      %s39 = sphi 0, %s36
      %s40 = sphi 0, %s39
      %s56 = sphi 0, %s40
      %s60 = sphi 0, %s60
      %s62 = sphi 0, %s60
      %s63 = sphi 0, %s62
      %s77 = sphi 0, %s63
      %s81 = sphi 0, %s81
      %s83 = sphi 0, %s81
      %s84 = sphi 0, %s83
      %s98 = sphi 0, %s84
      %s106 = sphi 0, %s108
      %s109 = sphi 0, %s106
      %s110 = sphi 0, %s109
      %s126 = sphi 0, %s110
    $region4: #{tpu_custom_call.1} parent=1 // loop_header_branch
      %15 = sbr.rel (%p13) target = $region8
    $region5: #{tpu_custom_call.1} parent=1 // loop_body
      %s17 = ssub.s32 %s12, 1
      %s18 = ssub.s32 %s12, 2
      %s25 = sadd.s32 1, %s20
      %p26 = scmp.ge.s32.totalorder %s25, 1
      %s27 = scalar_select %p26, 0, %s25
      %s28 = sadd.s32 1, %s19
      %s29 = scalar_select %p26, %s28, %s19
      %p30 = scmp.ge.s32.totalorder %s29, 2
      %s31 = scalar_select %p30, 0, %s29
      %s32 = ssub.s32 %s19, %s31
      %s33 = ssub.s32 %s20, %s27
      %s34 = sor.u32 %s32, %s33
      %p35 = scmp.eq.s32.totalorder %s34, 0
      %s37 = sadd.s32 %s36, 1
      %s38 = scalar_select %p35, %s36, %s37
      %p41 = pneg %p35
      %p42 = scmp.eq.s32.totalorder %s12, 1
      %p43 = por %p41, %p42
      %p44 = scmp.ne.s32.totalorder %s36, %s39
      %p45 = scmp.eq.s32.totalorder %s12, 0
      %p46 = por %p44, %p45
      %p47 = scmp.ne.s32.totalorder %s36, %s39
      %p48 = scmp.eq.s32.totalorder %s17, 1
      %p49 = por %p47, %p48
      %p50 = scmp.ne.s32.totalorder %s39, %s40
      %p51 = scmp.eq.s32.totalorder %s17, 0
      %p52 = por %p50, %p51
      %p53 = scmp.ne.s32.totalorder %s39, %s40
      %p54 = scmp.eq.s32.totalorder %s18, 1
      %p55 = por %p53, %p54
      %p57 = scmp.ne.s32.totalorder %s40, %s56
      %p58 = scmp.eq.s32.totalorder %s18, 0
      %p59 = por %p57, %p58
      %s61 = sadd.s32 %s60, 1
      %p64 = scmp.eq.s32.totalorder %s12, 1
      %p65 = scmp.ne.s32.totalorder %s60, %s62
      %p66 = scmp.eq.s32.totalorder %s12, 0
      %p67 = por %p65, %p66
      %p68 = scmp.ne.s32.totalorder %s60, %s62
      %p69 = scmp.eq.s32.totalorder %s17, 1
      %p70 = por %p68, %p69
      %p71 = scmp.ne.s32.totalorder %s62, %s63
      %p72 = scmp.eq.s32.totalorder %s17, 0
      %p73 = por %p71, %p72
      %p74 = scmp.ne.s32.totalorder %s62, %s63
      %p75 = scmp.eq.s32.totalorder %s18, 1
      %p76 = por %p74, %p75
      %p78 = scmp.ne.s32.totalorder %s63, %s77
      %p79 = scmp.eq.s32.totalorder %s18, 0
      %p80 = por %p78, %p79
      %s82 = sadd.s32 %s81, 1
      %p85 = scmp.eq.s32.totalorder %s12, 1
      %p86 = scmp.ne.s32.totalorder %s81, %s83
      %p87 = scmp.eq.s32.totalorder %s12, 0
      %p88 = por %p86, %p87
      %p89 = scmp.ne.s32.totalorder %s81, %s83
      %p90 = scmp.eq.s32.totalorder %s17, 1
      %p91 = por %p89, %p90
      %p92 = scmp.ne.s32.totalorder %s83, %s84
      %p93 = scmp.eq.s32.totalorder %s17, 0
      %p94 = por %p92, %p93
      %p95 = scmp.ne.s32.totalorder %s83, %s84
      %p96 = scmp.eq.s32.totalorder %s18, 1
      %p97 = por %p95, %p96
      %p99 = scmp.ne.s32.totalorder %s84, %s98
      %p100 = scmp.eq.s32.totalorder %s18, 0
      %p101 = por %p99, %p100
      %s102 = ssub.s32 %s19, %s31
      %s103 = ssub.s32 %s20, %s27
      %s104 = sor.u32 %s102, %s103
      %p105 = scmp.eq.s32.totalorder %s104, 0
      %s107 = sadd.s32 %s106, 1
      %s108 = scalar_select %p105, %s106, %s107
      %p111 = pneg %p105
      %p112 = scmp.eq.s32.totalorder %s12, 1
      %p113 = por %p111, %p112
      %p114 = scmp.ne.s32.totalorder %s106, %s109
      %p115 = scmp.eq.s32.totalorder %s12, 0
      %p116 = por %p114, %p115
      %p117 = scmp.ne.s32.totalorder %s106, %s109
      %p118 = scmp.eq.s32.totalorder %s17, 1
      %p119 = por %p117, %p118
      %p120 = scmp.ne.s32.totalorder %s109, %s110
      %p121 = scmp.eq.s32.totalorder %s17, 0
      %p122 = por %p120, %p121
      %p123 = scmp.ne.s32.totalorder %s109, %s110
      %p124 = scmp.eq.s32.totalorder %s18, 1
      %p125 = por %p123, %p124
      %p127 = scmp.ne.s32.totalorder %s110, %s126
      %p128 = scmp.eq.s32.totalorder %s18, 0
      %p129 = por %p127, %p128
      %p130 = scmp.le.s32.totalorder 1, %s12
      %p131 = scmp.lt.s32.totalorder %s12, 3
      %p132 = pnand %p130, %p131
      %p133 = pneg %p132
      // Predicated region
      $region9: #{tpu_custom_call.1} parent=5 // pred_check
        _
      $region10: #{tpu_custom_call.1} parent=5 // pred_check_branch
        %135 = sbr.rel (%p132) target = $region12
      $region11: #{tpu_custom_call.1} parent=5 // pred_region
        %s136 = ssub.s32 %s12, 1
        // Predicated region
        $region13: #{tpu_custom_call.1} parent=11 // pred_check
          %p137 = pneg %p73
        $region14: #{tpu_custom_call.1} parent=11 // pred_check_branch
          %139 = sbr.rel (%p137) target = $region16
        $region15: #{tpu_custom_call.1} parent=11 // pred_region
          _
        $region16: #{tpu_custom_call.1} parent=11 // pred_fallthru
          _
        // Predicated region
        $region17: #{tpu_custom_call.1} parent=11 // pred_check
          %p140 = pneg %p94
        $region18: #{tpu_custom_call.1} parent=11 // pred_check_branch
          %142 = sbr.rel (%p140) target = $region20
        $region19: #{tpu_custom_call.1} parent=11 // pred_region
          _
        $region20: #{tpu_custom_call.1} parent=11 // pred_fallthru
          _
      $region12: #{tpu_custom_call.1} parent=5 // pred_fallthru
        _
      %p143 = scmp.lt.s32.totalorder %s12, 2
      // Predicated region
      $region21: #{tpu_custom_call.1} parent=5 // pred_check
        %p144 = pneg %p143
      $region22: #{tpu_custom_call.1} parent=5 // pred_check_branch
        %146 = sbr.rel (%p144) target = $region24
      $region23: #{tpu_custom_call.1} parent=5 // pred_region
        // Predicated region
        $region25: #{tpu_custom_call.1} parent=23 // pred_check
          %p147 = pneg %p46
        $region26: #{tpu_custom_call.1} parent=23 // pred_check_branch
          %149 = sbr.rel (%p147) target = $region28
        $region27: #{tpu_custom_call.1} parent=23 // pred_region
          %p150 = scmp.lt.s32.totalorder %s19, 1
          %s151 = scalar_select %p150, %s19, 1
          %p152 = scmp.lt.s32.totalorder %s20, 0
          %s153 = scalar_select %p152, %s20, 0
          %s154 = smul.addr %s151, 2
          %s155 = sadd.s32 %s153, %s154
          %s156 = smul.addr %s155, 4
          %s157 = scalar_lea.vmem %s0, %s156
        $region28: #{tpu_custom_call.1} parent=23 // pred_fallthru
          _
      $region24: #{tpu_custom_call.1} parent=5 // pred_fallthru
        _
      %p158 = scmp.le.s32.totalorder 1, %s12
      %p159 = scmp.lt.s32.totalorder %s12, 3
      %p160 = pnand %p158, %p159
      %p161 = pneg %p160
      // Predicated region
      $region29: #{tpu_custom_call.1} parent=5 // pred_check
        _
      $region30: #{tpu_custom_call.1} parent=5 // pred_check_branch
        %163 = sbr.rel (%p160) target = $region32
      $region31: #{tpu_custom_call.1} parent=5 // pred_region
        %s164 = ssub.s32 %s12, 1
        %p165 = scmp.lt.s32.totalorder %s21, 1
        %s166 = scalar_select %p165, %s21, 1
        %p167 = scmp.lt.s32.totalorder %s22, 0
        %s168 = scalar_select %p167, %s22, 0
        %s169 = smul.addr %s166, 2
        %s170 = sadd.s32 %s168, %s169
        %s171 = smul.addr %s170, 4
        %s172 = scalar_lea.vmem %s0, %s171
        %p173 = pneg %p52
        %p174 = pneg %p49
        %p175 = pneg %p73
        %p176 = pneg %p70
        %p177 = pneg %p94
        %p178 = pneg %p91
        %p179 = pneg %p122
        %p180 = pneg %p119
        %s181 = sand.u32 %s109, 1
        %s182 = scalar_lea.sflag [#allocation3], %s181
        %s183 = sand.u32 %s109, 1
        %s184 = smul.addr %s183, 8
        %s185 = scalar_lea.vmem [#allocation2], %s184
        %p186 = scmp.lt.s32.totalorder %s21, 1
        %s187 = scalar_select %p186, %s21, 1
        %p188 = scmp.lt.s32.totalorder %s22, 0
        %s189 = scalar_select %p188, %s22, 0
        %s190 = smul.addr %s187, 2
        %s191 = sadd.s32 %s189, %s190
        %s192 = smul.addr %s191, 4
        %s193 = scalar_lea.vmem %s0, %s192
        %v195 = vld [vmem:[%s1] sm:$0xf]
        %v196 = vld [vmem:[%s193] sm:$0xf]
        %v197 = vld [vmem:[%s193 + $0x4] sm:$0x3]
        %v198 = vld [vmem:[%s2] sm:$0xff]
        %200 = vset.pattern.permute.xlu0 0
        %201 = vperm.xlu0 %200, %v198
        %v202 = vpop.permute.xlu0 %201
        %v206 = vunpack.c.l.b16 %v196
        %v207 = vunpack.c.l.b16 %v197
        %v208 = vpack.c.b16 %v207, %v206
        %vm209 = vcmask 97280
        %v211 = vsel %vm209, %v195, 0
        %vm213 = vcmask 1045504
        %v215 = vsel %vm213, %v208, 0
        %217 = vmatpush.bf16.msra.mxu0 0
        %218 = vmatpush.bf16.msra.mxu0 0
        %219 = vmatpush.bf16.msra.mxu0 0
        %220 = vmatpush.bf16.msra.mxu0 0
        %221 = vmatpush.bf16.msra.mxu0 0
        %222 = vmatpush.bf16.msra.mxu0 0
        %223 = vmatpush.bf16.msra.mxu0 0
        %224 = vmatpush.bf16.msra.mxu0 %v215
        %225 = vmatmul.bf16.gmra.mxu0 %v211
        %v226 = vpop.f32.mrf.mxu0
        %v227 = vadd.f32 %v202, %v226
        %v228 = vpop.f32.mrf.mxu0
        %229 = vdwg.mxu0
        %v230 = vmax.f32 %v227, 0.0
        %231 = vst [vmem:[%s185] sm:$0xff] %v230
        %s232 = sand.u32 %s109, 1
        %s233 = scalar_lea.sflag [#allocation3], %s232
        %s234 = sand.u32 %s109, 1
        %s235 = smul.addr %s234, 8
        %s236 = scalar_lea.vmem [#allocation2], %s235
        // Predicated region
        $region33: #{tpu_custom_call.1} parent=31 // pred_check
          %p237 = pneg %p119
        $region34: #{tpu_custom_call.1} parent=31 // pred_check_branch
          %239 = sbr.rel (%p237) target = $region36
        $region35: #{tpu_custom_call.1} parent=31 // pred_region
          %241 = vsyncadd %s233, 0
          %s242 = sadd.s32 %s22, %s21
          %s243 = smul.addr %s242, 8
          %s244 = scalar_lea.hbm %s3, %s243
          %s246 = sshll.u32 %s236, 4
          %s247 = int_to_ptr.vmem [resolvable:$true] %s246
          %s248 = sshll.u32 %s244, 4
          %s249 = int_to_ptr.hbm [resolvable:$true] %s248
          %251 = dma.vmem_to_hbm [thread:$0]  %s247, 128, %s249, %s233
        $region36: #{tpu_custom_call.1} parent=31 // pred_fallthru
          _
      $region32: #{tpu_custom_call.1} parent=5 // pred_fallthru
        _
      %p252 = scmp.le.s32.totalorder 2, %s12
      // Predicated region
      $region37: #{tpu_custom_call.1} parent=5 // pred_check
        %p253 = pneg %p252
      $region38: #{tpu_custom_call.1} parent=5 // pred_check_branch
        %255 = sbr.rel (%p253) target = $region40
      $region39: #{tpu_custom_call.1} parent=5 // pred_region
        %s256 = ssub.s32 %s12, 2
        // Predicated region
        $region41: #{tpu_custom_call.1} parent=39 // pred_check
          %p257 = pneg %p125
        $region42: #{tpu_custom_call.1} parent=39 // pred_check_branch
          %259 = sbr.rel (%p257) target = $region44
        $region43: #{tpu_custom_call.1} parent=39 // pred_region
          %s260 = sand.u32 %s110, 1
          %s261 = scalar_lea.sflag [#allocation3], %s260
          %s262 = sand.u32 %s110, 1
          %s263 = smul.addr %s262, 8
          %s264 = scalar_lea.vmem [#allocation2], %s263
          %266 = dma.done %s261, 128
        $region44: #{tpu_custom_call.1} parent=39 // pred_fallthru
          _
      $region40: #{tpu_custom_call.1} parent=5 // pred_fallthru
        _
    $region6: #{tpu_custom_call.1} parent=1 // loop_footer
      %s16 = sadd.s32 1, %s12
    $region7: #{tpu_custom_call.1} parent=1 // loop_footer_branch
      %11 = sbr.rel target = $region3
    $region8: #{tpu_custom_call.1} parent=1 // loop_exit
      _
    %267 = vsyncpa [#allocation3], 1
    %s268 = scalar_lea.sflag [#allocation3], 1
    %269 = vsyncpa %s268, 1

</llo_original>
